<compile_context>
chip_gen: v7x
topology: tpu7x:2x2x1
jax: 0.10.0
libtpu: 0.0.40
codegen_flags: <defaults>
</compile_context>

<pallas_src>
import jax
import jax.numpy as jnp
from jax.experimental import pallas as pl
from jax.experimental.pallas import tpu as pltpu

IGNORE_INDEX = 255

_LANE = 128                       # TPU lane width
_STEP_BYTES_TARGET = 6 * 1024 * 1024   # ~6 MiB of HBM traffic per grid step
_VMEM_LIMIT = 48 * 1024 * 1024    # <= v7x's 64 MiB physical VMEM


def _round_up(x, m):
    return ((x + m - 1) // m) * m


def _pick_tile_rows(r, bytes_per_row, override=None):
    """Choose the per-step row-tile (multiple of 32 so int8/uint8 tiling is legal)."""
    if override is not None:
        tr = int(override)
    else:
        tr = max(32, (_STEP_BYTES_TARGET // max(bytes_per_row, 1)) // 32 * 32)
    if r <= tr:
        return r, 1            # single full-extent tile
    return tr, -(-r // tr)     # partial last tile handled in-kernel


# ----------------------------- segmentation CE kernel -----------------------------
def _make_ce_kernel(num_classes, valid_rows):
    def kernel(logits_ref, labels_ref, out_ref, acc_ref):
        # logits_ref: (C, TRc, 128)   labels_ref: (TRc, 128) uint8
        # out_ref   : (2, 128) written once at the last tile
        # acc_ref   : (2, 128) f32 VMEM scratch [loss_sum_row, valid_count_row]
        t = pl.program_id(1)

        @pl.when(t == 0)
        def _():
            acc_ref[...] = jnp.zeros_like(acc_ref)

        lab = labels_ref[...].astype(jnp.int32)                      # (TRc, 128)
        trc = lab.shape[0]
        row = jax.lax.broadcasted_iota(jnp.int32, lab.shape, 0) + t * trc
        valid = (lab != IGNORE_INDEX) & (row < valid_rows)

        # online, numerically stable log-sum-exp over the class planes
        m = logits_ref[0].astype(jnp.float32)
        for cc in range(1, num_classes):
            m = jnp.maximum(m, logits_ref[cc].astype(jnp.float32))
        s = jnp.zeros_like(m)
        tgt = jnp.zeros_like(m)
        for cc in range(num_classes):
            x = logits_ref[cc].astype(jnp.float32)
            s = s + jnp.exp(x - m)
            tgt = jnp.where(lab == cc, x, tgt)
        lse = m + jnp.log(s)
        per = jnp.where(valid, lse - tgt, 0.0)                       # (TRc, 128)

        acc_ref[...] += jnp.concatenate(
            [jnp.sum(per, axis=0, keepdims=True),
             jnp.sum(valid.astype(jnp.float32), axis=0, keepdims=True)], axis=0)

        @pl.when(t == pl.num_programs(1) - 1)
        def _():
            out_ref[...] = acc_ref[...]

    return kernel


def seg_ce_loss(seg_logits, mask, *, tile_rows=None):
    """seg_logits: [N, C, H, W] float (f32/bf16); mask: [N, H, W] int (255=ignore)."""
    n, c, h, w = seg_logits.shape
    hw = h * w
    hwp = _round_up(hw, _LANE)

    logits = seg_logits.reshape(n, c, hw)
    labels = mask.reshape(n, hw).astype(jnp.uint8)
    if hwp != hw:
        # TODO(synk): handle the <128 ragged tail in-kernel instead of this pad copy.
        logits = jnp.pad(logits, ((0, 0), (0, 0), (0, hwp - hw)))
        labels = jnp.pad(labels, ((0, 0), (0, hwp - hw)),
                         constant_values=IGNORE_INDEX)
    r = hwp // _LANE
    logits = logits.reshape(n, c, r, _LANE)
    labels = labels.reshape(n, r, _LANE)

    bytes_per_row = _LANE * (c * seg_logits.dtype.itemsize + 1)
    trc, num_t = _pick_tile_rows(r, bytes_per_row, tile_rows)

    cost = pl.CostEstimate(
        flops=int(8 * n * c * r * _LANE),
        transcendentals=int(n * r * _LANE * (c + 1)),
        bytes_accessed=int(logits.size * logits.dtype.itemsize
                           + labels.size + n * 2 * _LANE * 4),
    )

    out = pl.pallas_call(
        _make_ce_kernel(c, r),
        out_shape=jax.ShapeDtypeStruct((n, 2, _LANE), jnp.float32),
        grid_spec=pltpu.PrefetchScalarGridSpec(
            num_scalar_prefetch=0,
            grid=(n, num_t),
            in_specs=[
                pl.BlockSpec((None, c, trc, _LANE), lambda i, t: (i, 0, t, 0)),
                pl.BlockSpec((None, trc, _LANE), lambda i, t: (i, t, 0)),
            ],
            out_specs=pl.BlockSpec((None, 2, _LANE), lambda i, t: (i, 0, 0)),
            scratch_shapes=[pltpu.VMEM((2, _LANE), jnp.float32)],
        ),
        compiler_params=pltpu.CompilerParams(
            dimension_semantics=("parallel", "arbitrary"),
            vmem_limit_bytes=_VMEM_LIMIT),
        cost_estimate=cost,
    )(logits, labels)

    total = jnp.sum(out[:, 0, :])
    count = jnp.sum(out[:, 1, :])
    # mean over valid pixels (NaN if none — matches nn.CrossEntropyLoss).
    return total / count


# ----------------------------- fused edge BCE2d kernel -----------------------------
def _make_bce_kernel(num_layers, valid_rows):
    def kernel(mask_ref, *args):
        # mask_ref          : (TR, 128) uint8 {0, 1, 255=ignore/pad}
        # args[:L]          : edge-logit tiles, (TR, 128) float
        # args[L]           : out_ref (2+2L, 128) written once at the last tile
        # args[L+1]         : acc_ref (2+2L, 128) f32 scratch
        #                     rows = [pos_cnt, neg_cnt, sum_pos_0, sum_neg_0, ...]
        edge_refs = args[:num_layers]
        out_ref = args[num_layers]
        acc_ref = args[num_layers + 1]
        t = pl.program_id(1)

        @pl.when(t == 0)
        def _():
            acc_ref[...] = jnp.zeros_like(acc_ref)

        m = mask_ref[...].astype(jnp.int32)                          # (TR, 128)
        tr = m.shape[0]
        row = jax.lax.broadcasted_iota(jnp.int32, m.shape, 0) + t * tr
        in_rng = row < valid_rows
        pos = (m == 1) & in_rng
        neg = (m == 0) & in_rng

        parts = [jnp.sum(pos.astype(jnp.float32), axis=0, keepdims=True),
                 jnp.sum(neg.astype(jnp.float32), axis=0, keepdims=True)]
        for l in range(num_layers):
            x = edge_refs[l][...].astype(jnp.float32)
            # stable BCE-with-logits: softplus(x) = max(x,0) + log(1+exp(-|x|))
            base = jnp.maximum(x, 0.0) + jnp.log(1.0 + jnp.exp(-jnp.abs(x)))
            parts.append(jnp.sum(jnp.where(pos, base - x, 0.0),
                                 axis=0, keepdims=True))     # positives: softplus(-x)
            parts.append(jnp.sum(jnp.where(neg, base, 0.0),
                                 axis=0, keepdims=True))     # negatives: softplus(x)
        acc_ref[...] += jnp.concatenate(parts, axis=0)

        @pl.when(t == pl.num_programs(1) - 1)
        def _():
            out_ref[...] = acc_ref[...]

    return kernel


def bce2d_fused(edge_preds, edge_mask, *, tile_rows=None):
    """edge_preds: list of [N, 1, H, W]; edge_mask: [N, H, W] (0/1 edge, >1 ignored).

    Returns a list of per-layer class-balanced BCE losses (== bce2d of the reference).
    """
    num_layers = len(edge_preds)
    n, _, h, w = edge_preds[0].shape
    hw = h * w
    hwp = _round_up(hw, _LANE)
    r = hwp // _LANE
    ncols = 2 + 2 * num_layers

    def prep(x, pad_value, dtype):
        x = x.reshape(n, hw).astype(dtype)
        if hwp != hw:
            # TODO(synk): handle the <128 ragged tail in-kernel instead of padding.
            x = jnp.pad(x, ((0, 0), (0, hwp - hw)), constant_values=pad_value)
        return x.reshape(n, r, _LANE)

    mask_t = prep(edge_mask, 255, jnp.uint8)          # 255 pad => ignored
    edge_t = [prep(e, 0, e.dtype) for e in edge_preds]

    pred_itemsize = edge_preds[0].dtype.itemsize
    bytes_per_row = _LANE * (num_layers * pred_itemsize + 1)
    tr, num_t = _pick_tile_rows(r, bytes_per_row, tile_rows)

    tile_spec = pl.BlockSpec((None, tr, _LANE), lambda i, t: (i, t, 0))
    cost = pl.CostEstimate(
        flops=int(12 * num_layers * n * r * _LANE),
        transcendentals=int(2 * num_layers * n * r * _LANE),
        bytes_accessed=int(n * r * _LANE * (num_layers * pred_itemsize + 1)
                           + n * ncols * _LANE * 4),
    )

    out = pl.pallas_call(
        _make_bce_kernel(num_layers, r),
        out_shape=jax.ShapeDtypeStruct((n, ncols, _LANE), jnp.float32),
        grid_spec=pltpu.PrefetchScalarGridSpec(
            num_scalar_prefetch=0,
            grid=(n, num_t),
            in_specs=[tile_spec] * (1 + num_layers),
            out_specs=pl.BlockSpec((None, ncols, _LANE), lambda i, t: (i, 0, 0)),
            scratch_shapes=[pltpu.VMEM((ncols, _LANE), jnp.float32)],
        ),
        compiler_params=pltpu.CompilerParams(
            dimension_semantics=("parallel", "arbitrary"),
            vmem_limit_bytes=_VMEM_LIMIT),
        cost_estimate=cost,
    )(mask_t, *edge_t)

    pos_num = jnp.sum(out[:, 0, :])
    neg_num = jnp.sum(out[:, 1, :])
    sum_num = pos_num + neg_num
    # size_average=True => mean over ALL (unpadded) N*H*W elements; ignore pixels get
    # weight 0. Guard the degenerate all-ignore case.
    denom = jnp.where(sum_num > 0.0, sum_num, 1.0) * jnp.float32(n * hw)

    losses = []
    for l in range(num_layers):
        sp = jnp.sum(out[:, 2 + 2 * l, :])   # sum of loss over positives
        sn = jnp.sum(out[:, 3 + 2 * l, :])   # sum of loss over negatives
        losses.append((neg_num * sp + pos_num * sn) / denom)
    return losses


# ----------------------------- module forward -----------------------------
def joint_edge_seg_light_loss(inputs, targets, *, edge_weight=1.0, seg_weight=1.0,
                              loss_weight=1.0):
    """Mirrors JointEdgeSegLightLoss.forward with default (ohem=False, dice=False)."""
    seg_in, edge_in = inputs
    mask, edge_mask = targets
    losses = {}
    losses['seg_loss'] = loss_weight * seg_weight * seg_ce_loss(seg_in, mask)
    edge_losses = bce2d_fused(list(edge_in), edge_mask)
    for i, el in enumerate(edge_losses):
        losses[f'edge_loss_layer{3 - i}'] = loss_weight * edge_weight * el
    return losses


# ----------------------------- pure-JAX references (for verification) -----------------------------
def _ref_seg_ce(seg_logits, mask):
    n, c, h, w = seg_logits.shape
    logits = seg_logits.astype(jnp.float32).transpose(0, 2, 3, 1).reshape(-1, c)
    labels = mask.reshape(-1).astype(jnp.int32)
    valid = labels != IGNORE_INDEX
    lse = jax.nn.logsumexp(logits, axis=-1)
    safe = jnp.where(valid, labels, 0)
    tgt = jnp.take_along_axis(logits, safe[:, None], axis=-1)[:, 0]
    per = jnp.where(valid, lse - tgt, 0.0)
    return jnp.sum(per) / jnp.sum(valid.astype(jnp.float32))


def _ref_bce2d(pred, target):
    x = pred.reshape(-1).astype(jnp.float32)
    t = target.reshape(-1).astype(jnp.float32)
    pos = t == 1.0
    neg = t == 0.0
    pos_num = jnp.sum(pos.astype(jnp.float32))
    neg_num = jnp.sum(neg.astype(jnp.float32))
    sum_num = pos_num + neg_num
    weight = jnp.where(pos, neg_num / sum_num,
                       jnp.where(neg, pos_num / sum_num, 0.0))
    base = jnp.maximum(x, 0.0) + jnp.log1p(jnp.exp(-jnp.abs(x)))
    loss_el = jnp.where(pos, base - x, base)
    return jnp.sum(weight * loss_el) / x.size


# ----------------------------- self-test -----------------------------
def _make_inputs(key, n, c, h, w):
    k1, k2, k3, k4, k5, k6, k7 = jax.random.split(key, 7)
    seg_in = jax.random.normal(k1, (n, c, h, w), jnp.float32)
    mask = jax.random.randint(k2, (n, h, w), 0, c).astype(jnp.int32)
    mask = jnp.where(jax.random.bernoulli(k3, 0.1, (n, h, w)), IGNORE_INDEX, mask)
    edge_in = [jax.random.normal(k4, (n, 1, h, w), jnp.float32),
               jax.random.normal(k5, (n, 1, h, w), jnp.float32)]
    edge_mask = jax.random.randint(k6, (n, h, w), 0, 2)
    edge_mask = jnp.where(jax.random.bernoulli(k7, 0.05, (n, h, w)),
                          255, edge_mask).astype(jnp.float32)
    return seg_in, mask, edge_in, edge_mask


def _check_case(key, n, c, h, w, tile_rows=None):
    seg_in, mask, edge_in, edge_mask = _make_inputs(key, n, c, h, w)

    seg = jax.block_until_ready(seg_ce_loss(seg_in, mask, tile_rows=tile_rows))
    edges = [jax.block_until_ready(e)
             for e in bce2d_fused(edge_in, edge_mask, tile_rows=tile_rows)]

    ref_seg = _ref_seg_ce(seg_in, mask)
    ref_edges = [_ref_bce2d(e, edge_mask) for e in edge_in]

    assert bool(jnp.isfinite(seg)), f"non-finite seg loss ({n},{c},{h},{w})"
    assert bool(jnp.allclose(seg, ref_seg, rtol=1e-4, atol=1e-5)), \
        f"seg mismatch ({n},{c},{h},{w}): {seg} vs {ref_seg}"
    for el, rel in zip(edges, ref_edges):
        assert bool(jnp.isfinite(el)), f"non-finite edge loss ({n},{c},{h},{w})"
        assert bool(jnp.allclose(el, rel, rtol=1e-4, atol=1e-5)), \
            f"edge mismatch ({n},{c},{h},{w}): {el} vs {rel}"


if __name__ == "__main__":
    key = jax.random.PRNGKey(0)
    k_a, k_b, k_c = jax.random.split(key, 3)

    # 1) basic small case (single full-extent tile, H*W multiple of 128)
    _check_case(k_a, n=2, c=4, h=16, w=16)
    # 2) H*W not a multiple of 128 -> pad-fallback path
    _check_case(k_b, n=2, c=4, h=20, w=20)
    # 3) multi-tile + partial last tile (50 pixel-rows, 32-row tiles)
    _check_case(k_c, n=2, c=4, h=80, w=80, tile_rows=32)

    # full module forward
    seg_in, mask, edge_in, edge_mask = _make_inputs(k_a, 2, 4, 16, 16)
    losses = joint_edge_seg_light_loss((seg_in, edge_in), (mask, edge_mask))
    losses = {k: jax.block_until_ready(v) for k, v in losses.items()}
    for name, val in losses.items():
        assert bool(jnp.isfinite(val)), f"non-finite loss {name}"

    print("KERNEL_OK")
</pallas_src>

<mosaic_0001>
module attributes {stable_mosaic.version = 11 : i64} {
  func.func @kernel(%arg0: i32, %arg1: i32, %arg2: memref<1x4x2x128xf32, #tpu.memory_space<vmem>>, %arg3: memref<1x2x128xi8, #tpu.memory_space<vmem>>, %arg4: memref<1x2x128xf32, #tpu.memory_space<vmem>>, %arg5: memref<2x128xf32, #tpu.memory_space<vmem>>) attributes {dimension_semantics = [#tpu.dimension_semantics<parallel>, #tpu.dimension_semantics<arbitrary>], iteration_bounds = array<i64: 2, 1>, scalar_prefetch = 0 : i64, scratch_operands = 1 : i64, tpu.core_type = #tpu.core_type<tc>, window_params = [{transform_indices = @transform_0, window_bounds = array<i64: 1, 4, 2, 128>}, {transform_indices = @transform_1, window_bounds = array<i64: 1, 2, 128>}, {transform_indices = @transform_2, window_bounds = array<i64: 1, 2, 128>}]} {
    %c0_i32 = arith.constant 0 : i32
    %0 = arith.cmpi eq, %arg1, %c0_i32 : i32
    %1 = arith.extui %0 : i1 to i32
    %c0_i32_0 = arith.constant 0 : i32
    %2 = arith.cmpi ne, %1, %c0_i32_0 : i32
    scf.if %2 {
      %cst_45 = arith.constant 0.000000e+00 : f32
      %78 = vector.broadcast %cst_45 : f32 to vector<2x128xf32>
      %c0_46 = arith.constant 0 : index
      %c0_47 = arith.constant 0 : index
      %79 = vector.load %arg5[%c0_46, %c0_47] : memref<2x128xf32, #tpu.memory_space<vmem>>, vector<2x128xf32>
      tpu.vector_store %arg5[%c0_46, %c0_47], %78 {strides = array<i32>} : memref<2x128xf32, #tpu.memory_space<vmem>>, vector<2x128xf32>,
    } else {
    }
    %c0 = arith.constant 0 : index
    %c0_1 = arith.constant 0 : index
    %c0_2 = arith.constant 0 : index
    %3 = vector.load %arg3[%c0, %c0_1, %c0_2] : memref<1x2x128xi8, #tpu.memory_space<vmem>>, vector<1x2x128xi8>
    %4 = vector.shape_cast %3 : vector<1x2x128xi8> to vector<2x128xi8>
    %5 = arith.extui %4 : vector<2x128xi8> to vector<2x128xi32>
    %6 = tpu.iota {dimensions = array<i32: 0>} : vector<2x128xi32>
    %c2_i32 = arith.constant 2 : i32
    %7 = arith.muli %arg1, %c2_i32 : i32
    %8 = vector.broadcast %7 : i32 to vector<2x128xi32>
    %9 = arith.addi %6, %8 : vector<2x128xi32>
    %c255_i32 = arith.constant 255 : i32
    %10 = vector.broadcast %c255_i32 : i32 to vector<2x128xi32>
    %11 = arith.cmpi ne, %5, %10 : vector<2x128xi32>
    %c2_i32_3 = arith.constant 2 : i32
    %12 = vector.broadcast %c2_i32_3 : i32 to vector<2x128xi32>
    %13 = arith.cmpi slt, %9, %12 : vector<2x128xi32>
    %14 = arith.andi %11, %13 : vector<2x128xi1>
    %c0_4 = arith.constant 0 : index
    %c0_5 = arith.constant 0 : index
    %c0_6 = arith.constant 0 : index
    %c0_7 = arith.constant 0 : index
    %15 = vector.load %arg2[%c0_4, %c0_5, %c0_6, %c0_7] : memref<1x4x2x128xf32, #tpu.memory_space<vmem>>, vector<1x1x2x128xf32>
    %16 = vector.shape_cast %15 : vector<1x1x2x128xf32> to vector<2x128xf32>
    %c0_8 = arith.constant 0 : index
    %c1 = arith.constant 1 : index
    %c0_9 = arith.constant 0 : index
    %c0_10 = arith.constant 0 : index
    %17 = vector.load %arg2[%c0_8, %c1, %c0_9, %c0_10] : memref<1x4x2x128xf32, #tpu.memory_space<vmem>>, vector<1x1x2x128xf32>
    %18 = vector.shape_cast %17 : vector<1x1x2x128xf32> to vector<2x128xf32>
    %19 = arith.maximumf %16, %18 : vector<2x128xf32>
    %c0_11 = arith.constant 0 : index
    %c2 = arith.constant 2 : index
    %c0_12 = arith.constant 0 : index
    %c0_13 = arith.constant 0 : index
    %20 = vector.load %arg2[%c0_11, %c2, %c0_12, %c0_13] : memref<1x4x2x128xf32, #tpu.memory_space<vmem>>, vector<1x1x2x128xf32>
    %21 = vector.shape_cast %20 : vector<1x1x2x128xf32> to vector<2x128xf32>
    %22 = arith.maximumf %19, %21 : vector<2x128xf32>
    %c0_14 = arith.constant 0 : index
    %c3 = arith.constant 3 : index
    %c0_15 = arith.constant 0 : index
    %c0_16 = arith.constant 0 : index
    %23 = vector.load %arg2[%c0_14, %c3, %c0_15, %c0_16] : memref<1x4x2x128xf32, #tpu.memory_space<vmem>>, vector<1x1x2x128xf32>
    %24 = vector.shape_cast %23 : vector<1x1x2x128xf32> to vector<2x128xf32>
    %25 = arith.maximumf %22, %24 : vector<2x128xf32>
    %cst = arith.constant 0.000000e+00 : f32
    %26 = vector.broadcast %cst : f32 to vector<2x128xf32>
    %cst_17 = arith.constant 0.000000e+00 : f32
    %27 = vector.broadcast %cst_17 : f32 to vector<2x128xf32>
    %c0_18 = arith.constant 0 : index
    %c0_19 = arith.constant 0 : index
    %c0_20 = arith.constant 0 : index
    %c0_21 = arith.constant 0 : index
    %28 = vector.load %arg2[%c0_18, %c0_19, %c0_20, %c0_21] : memref<1x4x2x128xf32, #tpu.memory_space<vmem>>, vector<1x1x2x128xf32>
    %29 = vector.shape_cast %28 : vector<1x1x2x128xf32> to vector<2x128xf32>
    %30 = arith.subf %29, %25 : vector<2x128xf32>
    %31 = math.exp %30 : vector<2x128xf32>
    %32 = arith.addf %26, %31 : vector<2x128xf32>
    %c0_i32_22 = arith.constant 0 : i32
    %33 = vector.broadcast %c0_i32_22 : i32 to vector<2x128xi32>
    %34 = arith.cmpi eq, %5, %33 : vector<2x128xi32>
    %35 = arith.select %34, %29, %27 : vector<2x128xi1>, vector<2x128xf32>
    %c0_23 = arith.constant 0 : index
    %c1_24 = arith.constant 1 : index
    %c0_25 = arith.constant 0 : index
    %c0_26 = arith.constant 0 : index
    %36 = vector.load %arg2[%c0_23, %c1_24, %c0_25, %c0_26] : memref<1x4x2x128xf32, #tpu.memory_space<vmem>>, vector<1x1x2x128xf32>
    %37 = vector.shape_cast %36 : vector<1x1x2x128xf32> to vector<2x128xf32>
    %38 = arith.subf %37, %25 : vector<2x128xf32>
    %39 = math.exp %38 : vector<2x128xf32>
    %40 = arith.addf %32, %39 : vector<2x128xf32>
    %c1_i32 = arith.constant 1 : i32
    %41 = vector.broadcast %c1_i32 : i32 to vector<2x128xi32>
    %42 = arith.cmpi eq, %5, %41 : vector<2x128xi32>
    %43 = arith.select %42, %37, %35 : vector<2x128xi1>, vector<2x128xf32>
    %c0_27 = arith.constant 0 : index
    %c2_28 = arith.constant 2 : index
    %c0_29 = arith.constant 0 : index
    %c0_30 = arith.constant 0 : index
    %44 = vector.load %arg2[%c0_27, %c2_28, %c0_29, %c0_30] : memref<1x4x2x128xf32, #tpu.memory_space<vmem>>, vector<1x1x2x128xf32>
    %45 = vector.shape_cast %44 : vector<1x1x2x128xf32> to vector<2x128xf32>
    %46 = arith.subf %45, %25 : vector<2x128xf32>
    %47 = math.exp %46 : vector<2x128xf32>
    %48 = arith.addf %40, %47 : vector<2x128xf32>
    %c2_i32_31 = arith.constant 2 : i32
    %49 = vector.broadcast %c2_i32_31 : i32 to vector<2x128xi32>
    %50 = arith.cmpi eq, %5, %49 : vector<2x128xi32>
    %51 = arith.select %50, %45, %43 : vector<2x128xi1>, vector<2x128xf32>
    %c0_32 = arith.constant 0 : index
    %c3_33 = arith.constant 3 : index
    %c0_34 = arith.constant 0 : index
    %c0_35 = arith.constant 0 : index
    %52 = vector.load %arg2[%c0_32, %c3_33, %c0_34, %c0_35] : memref<1x4x2x128xf32, #tpu.memory_space<vmem>>, vector<1x1x2x128xf32>
    %53 = vector.shape_cast %52 : vector<1x1x2x128xf32> to vector<2x128xf32>
    %54 = arith.subf %53, %25 : vector<2x128xf32>
    %55 = math.exp %54 : vector<2x128xf32>
    %56 = arith.addf %48, %55 : vector<2x128xf32>
    %c3_i32 = arith.constant 3 : i32
    %57 = vector.broadcast %c3_i32 : i32 to vector<2x128xi32>
    %58 = arith.cmpi eq, %5, %57 : vector<2x128xi32>
    %59 = arith.select %58, %53, %51 : vector<2x128xi1>, vector<2x128xf32>
    %60 = math.log %56 : vector<2x128xf32>
    %61 = arith.addf %25, %60 : vector<2x128xf32>
    %62 = arith.subf %61, %59 : vector<2x128xf32>
    %cst_36 = arith.constant 0.000000e+00 : f32
    %63 = vector.broadcast %cst_36 : f32 to vector<2x128xf32>
    %64 = arith.select %14, %62, %63 : vector<2x128xi1>, vector<2x128xf32>
    %c0_37 = arith.constant 0 : index
    %c0_38 = arith.constant 0 : index
    %65 = vector.load %arg5[%c0_37, %c0_38] : memref<2x128xf32, #tpu.memory_space<vmem>>, vector<2x128xf32>
    %cst_39 = arith.constant dense<0.000000e+00> : vector<128xf32>
    %66 = vector.multi_reduction <add>, %64, %cst_39 [0] : vector<2x128xf32> to vector<128xf32>
    %67 = vector.shape_cast %66 : vector<128xf32> to vector<1x128xf32>
    %68 = arith.extui %14 : vector<2x128xi1> to vector<2x128xi32>
    %69 = arith.sitofp %68 : vector<2x128xi32> to vector<2x128xf32>
    %cst_40 = arith.constant dense<0.000000e+00> : vector<128xf32>
    %70 = vector.multi_reduction <add>, %69, %cst_40 [0] : vector<2x128xf32> to vector<128xf32>
    %71 = vector.shape_cast %70 : vector<128xf32> to vector<1x128xf32>
    %72 = tpu.concatenate %67, %71 in 0 : vector<1x128xf32>, vector<1x128xf32> -> vector<2x128xf32>
    %73 = arith.addf %65, %72 : vector<2x128xf32>
    %c0_41 = arith.constant 0 : index
    %c0_42 = arith.constant 0 : index
    %74 = vector.load %arg5[%c0_41, %c0_42] : memref<2x128xf32, #tpu.memory_space<vmem>>, vector<2x128xf32>
    tpu.vector_store %arg5[%c0_41, %c0_42], %73 {strides = array<i32>} : memref<2x128xf32, #tpu.memory_space<vmem>>, vector<2x128xf32>,
    %c0_i32_43 = arith.constant 0 : i32
    %75 = arith.cmpi eq, %arg1, %c0_i32_43 : i32
    %76 = arith.extui %75 : i1 to i32
    %c0_i32_44 = arith.constant 0 : i32
    %77 = arith.cmpi ne, %76, %c0_i32_44 : i32
    scf.if %77 {
      %c0_45 = arith.constant 0 : index
      %c0_46 = arith.constant 0 : index
      %78 = vector.load %arg5[%c0_45, %c0_46] : memref<2x128xf32, #tpu.memory_space<vmem>>, vector<2x128xf32>
      %c0_47 = arith.constant 0 : index
      %c0_48 = arith.constant 0 : index
      %c0_49 = arith.constant 0 : index
      %79 = vector.load %arg4[%c0_47, %c0_48, %c0_49] : memref<1x2x128xf32, #tpu.memory_space<vmem>>, vector<1x2x128xf32>
      %80 = vector.shape_cast %79 : vector<1x2x128xf32> to vector<2x128xf32>
      %81 = vector.shape_cast %78 : vector<2x128xf32> to vector<1x2x128xf32>
      tpu.vector_store %arg4[%c0_47, %c0_48, %c0_49], %81 {strides = array<i32>} : memref<1x2x128xf32, #tpu.memory_space<vmem>>, vector<1x2x128xf32>,
    } else {
    }
    return
  }
  func.func @transform_0(%arg0: i32, %arg1: i32) -> (i32, i32, i32, i32) {
    %c0_i32 = arith.constant 0 : i32
    %c0_i32_0 = arith.constant 0 : i32
    %c0_i32_1 = arith.constant 0 : i32
    return %arg0, %c0_i32, %arg1, %c0_i32_0 : i32, i32, i32, i32
  }
  func.func @transform_1(%arg0: i32, %arg1: i32) -> (i32, i32, i32) {
    %c0_i32 = arith.constant 0 : i32
    %c0_i32_0 = arith.constant 0 : i32
    return %arg0, %arg1, %c0_i32 : i32, i32, i32
  }
  func.func @transform_2(%arg0: i32, %arg1: i32) -> (i32, i32, i32) {
    %c0_i32 = arith.constant 0 : i32
    %c0_i32_0 = arith.constant 0 : i32
    %c0_i32_1 = arith.constant 0 : i32
    return %arg0, %c0_i32, %c0_i32_0 : i32, i32, i32
  }
}

</mosaic_0001>

<llo_original>
// kernel: tpu_custom_call.1
$region0: #{tpu_custom_call.1}
  #allocation0 [shape = 'u32[]', space=smem, size = 0x4, offset = 0x4, fixed_abs, tag = 'smem constant byte address 0x4 - core index']
  #allocation1 [shape = 'u32[144,128]{1,0:T(1,128)}', space=vmem, size = 0x12000, scoped, tag = 'internal scratch']
  #allocation2 [shape = 'f32[2,128]{1,0:T(2,128)}', space=vmem, size = 0x400, scoped, tag = 'scratch operand']
  %s0 = inlined_call_operand.hbm [shape: f32[2,4,2,128], index: 0, kind: input, shape index: {}]
  %s1 = inlined_call_operand.vmem [shape: u8[2,2,128], index: 1, kind: input, shape index: {}]
  %s2 = inlined_call_operand.hbm [shape: f32[2,2,128], index: 2, kind: output, shape index: {}]
  %s3 = sld [smem:[#allocation0]]
  $region53: #{tpu_custom_call.1} parent=0
    _
  %s5 = ssub.s32 1, %s3
  %s6 = scalar_select 0, %s5, %s3
  $region1: #{tpu_custom_call.1} parent=0
    #allocation3 [shape = 'u8[8192]{0}', space=vmem, size = 0x2000, scoped, tag = 'input window, operand 0']
    #allocation4 [shape = 's32[2]{0}', space=sflag, size = 0x8, scoped, tag = 'scoped memory for tpu_custom_call.1']
    #allocation5 [shape = 's32[2]{0}', space=sflag, size = 0x8, scoped, tag = 'scoped memory for tpu_custom_call.1']
    #allocation6 [shape = 'u8[2048]{0}', space=vmem, size = 0x800, scoped, tag = 'output window, operand 0']
    %7 = vsyncpa [#allocation4], 0
    %s8 = scalar_lea.sflag [#allocation4], 1
    %9 = vsyncpa %s8, 0
    %10 = vsyncpa [#allocation5], 0
    %s11 = scalar_lea.sflag [#allocation5], 1
    %12 = vsyncpa %s11, 0
    loop: start=0, step=1, limit=4
    $region2: #{tpu_custom_call.1} parent=1 // loop_pre_header
      _
    $region3: #{tpu_custom_call.1} parent=1 // loop_header
      %s14 = sphi 0, %s18
      %p15 = scmp.ge.s32.totalorder %s14, 4
      %s21 = sphi 0, %s33
      %s22 = sphi 0, %s29
      %s23 = sphi 0, %s21
      %s24 = sphi 0, %s22
      %s25 = sphi 0, %s23
      %s26 = sphi 0, %s24
      %s38 = sphi 0, %s40
      %s41 = sphi 0, %s38
      %s42 = sphi 0, %s41
      %s58 = sphi 0, %s42
      %s66 = sphi 0, %s68
      %s69 = sphi 0, %s66
      %s70 = sphi 0, %s69
      %s86 = sphi 0, %s70
      %s92 = sphi 0, %s94
      %s95 = sphi 0, %s92
      %s96 = sphi 0, %s95
      %s112 = sphi 0, %s96
    $region4: #{tpu_custom_call.1} parent=1 // loop_header_branch
      %17 = sbr.rel (%p15) target = $region8
    $region5: #{tpu_custom_call.1} parent=1 // loop_body
      %s19 = ssub.s32 %s14, 1
      %s20 = ssub.s32 %s14, 2
      %s27 = sadd.s32 1, %s22
      %p28 = scmp.ge.s32.totalorder %s27, 1
      %s29 = scalar_select %p28, 0, %s27
      %s30 = sadd.s32 1, %s21
      %s31 = scalar_select %p28, %s30, %s21
      %p32 = scmp.ge.s32.totalorder %s31, 2
      %s33 = scalar_select %p32, 0, %s31
      %s34 = ssub.s32 %s21, %s33
      %s35 = ssub.s32 %s22, %s29
      %s36 = sor.u32 %s34, %s35
      %p37 = scmp.eq.s32.totalorder %s36, 0
      %s39 = sadd.s32 %s38, 1
      %s40 = scalar_select %p37, %s38, %s39
      %p43 = pneg %p37
      %p44 = scmp.eq.s32.totalorder %s14, 1
      %p45 = por %p43, %p44
      %p46 = scmp.ne.s32.totalorder %s38, %s41
      %p47 = scmp.eq.s32.totalorder %s14, 0
      %p48 = por %p46, %p47
      %p49 = scmp.ne.s32.totalorder %s38, %s41
      %p50 = scmp.eq.s32.totalorder %s19, 1
      %p51 = por %p49, %p50
      %p52 = scmp.ne.s32.totalorder %s41, %s42
      %p53 = scmp.eq.s32.totalorder %s19, 0
      %p54 = por %p52, %p53
      %p55 = scmp.ne.s32.totalorder %s41, %s42
      %p56 = scmp.eq.s32.totalorder %s20, 1
      %p57 = por %p55, %p56
      %p59 = scmp.ne.s32.totalorder %s42, %s58
      %p60 = scmp.eq.s32.totalorder %s20, 0
      %p61 = por %p59, %p60
      %s62 = ssub.s32 %s21, %s33
      %s63 = ssub.s32 %s22, %s29
      %s64 = sor.u32 %s62, %s63
      %p65 = scmp.eq.s32.totalorder %s64, 0
      %s67 = sadd.s32 %s66, 1
      %s68 = scalar_select %p65, %s66, %s67
      %p71 = pneg %p65
      %p72 = scmp.eq.s32.totalorder %s14, 1
      %p73 = por %p71, %p72
      %p74 = scmp.ne.s32.totalorder %s66, %s69
      %p75 = scmp.eq.s32.totalorder %s14, 0
      %p76 = por %p74, %p75
      %p77 = scmp.ne.s32.totalorder %s66, %s69
      %p78 = scmp.eq.s32.totalorder %s19, 1
      %p79 = por %p77, %p78
      %p80 = scmp.ne.s32.totalorder %s69, %s70
      %p81 = scmp.eq.s32.totalorder %s19, 0
      %p82 = por %p80, %p81
      %p83 = scmp.ne.s32.totalorder %s69, %s70
      %p84 = scmp.eq.s32.totalorder %s20, 1
      %p85 = por %p83, %p84
      %p87 = scmp.ne.s32.totalorder %s70, %s86
      %p88 = scmp.eq.s32.totalorder %s20, 0
      %p89 = por %p87, %p88
      %s90 = ssub.s32 %s21, %s33
      %p91 = scmp.eq.s32.totalorder %s90, 0
      %s93 = sadd.s32 %s92, 1
      %s94 = scalar_select %p91, %s92, %s93
      %p97 = pneg %p91
      %p98 = scmp.eq.s32.totalorder %s14, 1
      %p99 = por %p97, %p98
      %p100 = scmp.ne.s32.totalorder %s92, %s95
      %p101 = scmp.eq.s32.totalorder %s14, 0
      %p102 = por %p100, %p101
      %p103 = scmp.ne.s32.totalorder %s92, %s95
      %p104 = scmp.eq.s32.totalorder %s19, 1
      %p105 = por %p103, %p104
      %p106 = scmp.ne.s32.totalorder %s95, %s96
      %p107 = scmp.eq.s32.totalorder %s19, 0
      %p108 = por %p106, %p107
      %p109 = scmp.ne.s32.totalorder %s95, %s96
      %p110 = scmp.eq.s32.totalorder %s20, 1
      %p111 = por %p109, %p110
      %p113 = scmp.ne.s32.totalorder %s96, %s112
      %p114 = scmp.eq.s32.totalorder %s20, 0
      %p115 = por %p113, %p114
      %p116 = scmp.le.s32.totalorder 1, %s14
      %p117 = scmp.lt.s32.totalorder %s14, 3
      %p118 = pnand %p116, %p117
      %p119 = pneg %p118
      // Predicated region
      $region9: #{tpu_custom_call.1} parent=5 // pred_check
        _
      $region10: #{tpu_custom_call.1} parent=5 // pred_check_branch
        %121 = sbr.rel (%p118) target = $region12
      $region11: #{tpu_custom_call.1} parent=5 // pred_region
        %s122 = ssub.s32 %s14, 1
      $region12: #{tpu_custom_call.1} parent=5 // pred_fallthru
        _
      %p123 = scmp.lt.s32.totalorder %s14, 2
      // Predicated region
      $region13: #{tpu_custom_call.1} parent=5 // pred_check
        %p124 = pneg %p123
      $region14: #{tpu_custom_call.1} parent=5 // pred_check_branch
        %126 = sbr.rel (%p124) target = $region16
      $region15: #{tpu_custom_call.1} parent=5 // pred_region
        // Predicated region
        $region17: #{tpu_custom_call.1} parent=15 // pred_check
          %p127 = pneg %p48
        $region18: #{tpu_custom_call.1} parent=15 // pred_check_branch
          %129 = sbr.rel (%p127) target = $region20
        $region19: #{tpu_custom_call.1} parent=15 // pred_region
          %s130 = sand.u32 %s38, 1
          %s131 = scalar_lea.sflag [#allocation4], %s130
          %s132 = sand.u32 %s38, 1
          %s133 = smul.addr %s132, 8
          %s134 = scalar_lea.vmem [#allocation3], %s133
          %s136 = ssub.s32 128, 128
          %137 = vsyncadd %s131, %s136
          %s138 = smul.addr %s21, 4
          %s139 = sadd.s32 %s22, %s138
          %s140 = smul.addr %s139, 32
          %s141 = scalar_lea.hbm %s0, %s140
          %s142 = sshll.u32 %s134, 4
          %s143 = int_to_ptr.vmem [resolvable:$true] %s142
          %148 = dma.hbm_to_vmem [thread:$0]  %s141, 128, %s143, %s131, 32, 32, 2
        $region20: #{tpu_custom_call.1} parent=15 // pred_fallthru
          _
        // Predicated region
        $region21: #{tpu_custom_call.1} parent=15 // pred_check
          %p149 = pneg %p76
        $region22: #{tpu_custom_call.1} parent=15 // pred_check_branch
          %151 = sbr.rel (%p149) target = $region24
        $region23: #{tpu_custom_call.1} parent=15 // pred_region
          %p152 = scmp.lt.s32.totalorder %s21, 1
          %s153 = scalar_select %p152, %s21, 1
          %p154 = scmp.lt.s32.totalorder %s22, 0
          %s155 = scalar_select %p154, %s22, 0
          %s156 = sadd.s32 %s155, %s153
          %s157 = scalar_lea.vmem %s1, %s156
        $region24: #{tpu_custom_call.1} parent=15 // pred_fallthru
          _
      $region16: #{tpu_custom_call.1} parent=5 // pred_fallthru
        _
      %p158 = scmp.le.s32.totalorder 1, %s14
      %p159 = scmp.lt.s32.totalorder %s14, 3
      %p160 = pnand %p158, %p159
      %p161 = pneg %p160
      // Predicated region
      $region25: #{tpu_custom_call.1} parent=5 // pred_check
        _
      $region26: #{tpu_custom_call.1} parent=5 // pred_check_branch
        %163 = sbr.rel (%p160) target = $region28
      $region27: #{tpu_custom_call.1} parent=5 // pred_region
        %s164 = ssub.s32 %s14, 1
        %s165 = sand.u32 %s41, 1
        %s166 = scalar_lea.sflag [#allocation4], %s165
        %s167 = sand.u32 %s41, 1
        %s168 = smul.addr %s167, 8
        %s169 = scalar_lea.vmem [#allocation3], %s168
        // Predicated region
        $region29: #{tpu_custom_call.1} parent=27 // pred_check
          %p170 = pneg %p54
        $region30: #{tpu_custom_call.1} parent=27 // pred_check_branch
          %172 = sbr.rel (%p170) target = $region32
        $region31: #{tpu_custom_call.1} parent=27 // pred_region
          %173 = dma.done %s166, 128
        $region32: #{tpu_custom_call.1} parent=27 // pred_fallthru
          _
        %s174 = sand.u32 %s41, 1
        %s175 = scalar_lea.sflag [#allocation4], %s174
        %s176 = sand.u32 %s41, 1
        %s177 = smul.addr %s176, 8
        %s178 = scalar_lea.vmem [#allocation3], %s177
        %p179 = pneg %p54
        %p180 = pneg %p51
        %p181 = scmp.lt.s32.totalorder %s23, 1
        %s182 = scalar_select %p181, %s23, 1
        %p183 = scmp.lt.s32.totalorder %s24, 0
        %s184 = scalar_select %p183, %s24, 0
        %s185 = sadd.s32 %s184, %s182
        %s186 = scalar_lea.vmem %s1, %s185
        %p187 = pneg %p82
        %p188 = pneg %p79
        %p189 = pneg %p108
        %p190 = pneg %p105
        %s191 = sand.u32 %s95, 1
        %s192 = scalar_lea.sflag [#allocation5], %s191
        %s193 = sand.u32 %s95, 1
        %s194 = smul.addr %s193, 2
        %s195 = scalar_lea.vmem [#allocation6], %s194
        %p196 = scmp.lt.s32.totalorder %s23, 1
        %s197 = scalar_select %p196, %s23, 1
        %p198 = scmp.lt.s32.totalorder %s24, 0
        %s199 = scalar_select %p198, %s24, 0
        %s200 = sadd.s32 %s199, %s197
        %s201 = scalar_lea.vmem %s1, %s200
        %p202 = scmp.eq.s32.totalorder %s24, 0
        // Predicated region
        $region33: #{tpu_custom_call.1} parent=27 // pred_check
          %p203 = pneg %p202
        $region34: #{tpu_custom_call.1} parent=27 // pred_check_branch
          %205 = sbr.rel (%p203) target = $region36
        $region35: #{tpu_custom_call.1} parent=27 // pred_region
          %206 = vst [vmem:[#allocation2] sm:$0x3] 0.0
        $region36: #{tpu_custom_call.1} parent=27 // pred_fallthru
          _
        %v207 = vld [vmem:[%s201] sm:$0x1]
        %v208 = vunpack.c.0.s8 %v207
        %v209 = vand.u32 %v208, 255
        %v210 = vlaneseq
        %v211 = vshrl.u32 %v210, 7
        %s212 = smul.u32 %s24, 2
        %v213 = vstv %s212
        %v214 = vadd.s32 %v211, %v213
        %vm215 = vcmp.ne.s32.totalorder %v209, 255
        %vm216 = vcmp.lt.s32.totalorder %v214, 2
        %vm217 = vmand %vm215, %vm216
        %v218 = vld [vmem:[%s169] sm:$0x3]
        %s219 = scalar_lea.vmem %s169, 2 [#allocation3]
        %v220 = vld [vmem:[%s219] sm:$0x3]
        %v221 = vmax.f32 %v218, %v220
        %s222 = scalar_lea.vmem %s169, 4 [#allocation3]
        %v223 = vld [vmem:[%s222] sm:$0x3]
        %v224 = vmax.f32 %v221, %v223
        %s225 = scalar_lea.vmem %s169, 6 [#allocation3]
        %v226 = vld [vmem:[%s225] sm:$0x3]
        %v227 = vmax.f32 %v224, %v226
        %v228 = vsub.f32 %v218, %v227
        %v229 = vmul.f32 %v228, 1.442695
        %v230 = vpow.pop %v229
        %v231 = vadd.f32 %v230, 0.0
        %vm232 = vcmp.eq.s32.totalorder %v209, 0
        %v233 = vsel %vm232, %v218, 0.0
        %v234 = vsub.f32 %v220, %v227
        %v235 = vmul.f32 %v234, 1.442695
        %v236 = vpow.pop %v235
        %v237 = vadd.f32 %v231, %v236
        %vm238 = vcmp.eq.s32.totalorder %v209, 1
        %v239 = vsel %vm238, %v220, %v233
        %v240 = vsub.f32 %v223, %v227
        %v241 = vmul.f32 %v240, 1.442695
        %v242 = vpow.pop %v241
        %v243 = vadd.f32 %v237, %v242
        %vm244 = vcmp.eq.s32.totalorder %v209, 2
        %v245 = vsel %vm244, %v223, %v239
        %v246 = vsub.f32 %v226, %v227
        %v247 = vmul.f32 %v246, 1.442695
        %v248 = vpow.pop %v247
        %v249 = vadd.f32 %v243, %v248
        %vm250 = vcmp.eq.s32.totalorder %v209, 3
        %v251 = vsel %vm250, %v226, %v245
        %v252 = vlog2.pop %v249
        %v253 = vmul.f32 %v252, 0.6931472
        %v254 = vadd.f32 %v227, %v253
        %v255 = vsub.f32 %v254, %v251
        %v256 = vsel %vm217, %v255, 0.0
        %v257 = vld [vmem:[#allocation2] sm:$0x3]
        %vm258 = vcmask 1041408
        %v259 = vsel %vm258, %v256, 0.0
        %v260 = vrot.slane %v259, 4
        %v261 = vadd.f32 %v259, %v260
        %v262 = vrot.slane %v261, 2
        %v263 = vadd.f32 %v261, %v262
        %v264 = vrot.slane %v263, 1
        %v265 = vadd.f32 %v263, %v264
        %v266 = vsel %vm217, 1, 0
        %v267 = vcvt.s32.f32 %v266
        %v268 = vsel %vm258, %v267, 0.0
        %v269 = vrot.slane %v268, 4
        %v270 = vadd.f32 %v268, %v269
        %v271 = vrot.slane %v270, 2
        %v272 = vadd.f32 %v270, %v271
        %v273 = vrot.slane %v272, 1
        %v274 = vadd.f32 %v272, %v273
        %vm275 = vcmask 1040384
        %v276 = vsel %vm275, %v265, %v274
        %v277 = vadd.f32 %v257, %v276
        %278 = vst [vmem:[#allocation2] sm:$0x3] %v277
        // Predicated region
        $region37: #{tpu_custom_call.1} parent=27 // pred_check
          %p279 = pneg %p202
        $region38: #{tpu_custom_call.1} parent=27 // pred_check_branch
          %281 = sbr.rel (%p279) target = $region40
        $region39: #{tpu_custom_call.1} parent=27 // pred_region
          %v282 = vld [vmem:[#allocation2] sm:$0x3]
          %283 = vst [vmem:[%s195] sm:$0x3] %v282
        $region40: #{tpu_custom_call.1} parent=27 // pred_fallthru
          _
        %s284 = sand.u32 %s95, 1
        %s285 = scalar_lea.sflag [#allocation5], %s284
        %s286 = sand.u32 %s95, 1
        %s287 = smul.addr %s286, 2
        %s288 = scalar_lea.vmem [#allocation6], %s287
        // Predicated region
        $region41: #{tpu_custom_call.1} parent=27 // pred_check
          %p289 = pneg %p105
        $region42: #{tpu_custom_call.1} parent=27 // pred_check_branch
          %291 = sbr.rel (%p289) target = $region44
        $region43: #{tpu_custom_call.1} parent=27 // pred_region
          %s293 = ssub.s32 32, 32
          %294 = vsyncadd %s285, %s293
          %s295 = smul.addr %s23, 32
          %s296 = scalar_lea.hbm %s2, %s295
          %s298 = sshll.u32 %s288, 4
          %s299 = int_to_ptr.vmem [resolvable:$true] %s298
          %301 = dma.vmem_to_hbm [thread:$0]  %s299, 32, %s296, %s285
        $region44: #{tpu_custom_call.1} parent=27 // pred_fallthru
          _
      $region28: #{tpu_custom_call.1} parent=5 // pred_fallthru
        _
      %p302 = scmp.le.s32.totalorder 2, %s14
      // Predicated region
      $region45: #{tpu_custom_call.1} parent=5 // pred_check
        %p303 = pneg %p302
      $region46: #{tpu_custom_call.1} parent=5 // pred_check_branch
        %305 = sbr.rel (%p303) target = $region48
      $region47: #{tpu_custom_call.1} parent=5 // pred_region
        %s306 = ssub.s32 %s14, 2
        // Predicated region
        $region49: #{tpu_custom_call.1} parent=47 // pred_check
          %p307 = pneg %p111
        $region50: #{tpu_custom_call.1} parent=47 // pred_check_branch
          %309 = sbr.rel (%p307) target = $region52
        $region51: #{tpu_custom_call.1} parent=47 // pred_region
          %s310 = sand.u32 %s96, 1
          %s311 = scalar_lea.sflag [#allocation5], %s310
          %s312 = sand.u32 %s96, 1
          %s313 = smul.addr %s312, 2
          %s314 = scalar_lea.vmem [#allocation6], %s313
          %315 = dma.done %s311, 32
        $region52: #{tpu_custom_call.1} parent=47 // pred_fallthru
          _
      $region48: #{tpu_custom_call.1} parent=5 // pred_fallthru
        _
    $region6: #{tpu_custom_call.1} parent=1 // loop_footer
      %s18 = sadd.s32 1, %s14
    $region7: #{tpu_custom_call.1} parent=1 // loop_footer_branch
      %13 = sbr.rel target = $region3
    $region8: #{tpu_custom_call.1} parent=1 // loop_exit
      _
    %316 = vsyncpa [#allocation4], 1
    %s317 = scalar_lea.sflag [#allocation4], 1
    %318 = vsyncpa %s317, 1
    %319 = vsyncpa [#allocation5], 1
    %s320 = scalar_lea.sflag [#allocation5], 1
    %321 = vsyncpa %s320, 1

</llo_original>
